<compile_context>
chip_gen: v7x
topology: tpu7x:2x2x1
jax: 0.10.0
libtpu: 0.0.40
codegen_flags: <defaults>
</compile_context>

<pallas_src>
import numpy as np
import jax
import jax.numpy as jnp
from jax.experimental import pallas as pl
from jax.experimental.pallas import tpu as pltpu


# ----------------------------- in-kernel math helpers -----------------------------
def _softplus(x):
    # matches torch.nn.Softplus (beta=1, threshold=20)
    return jnp.where(x > 20.0, x, jnp.log(1.0 + jnp.exp(jnp.minimum(x, 20.0))))


def _sigmoid(x):
    return 1.0 / (1.0 + jnp.exp(-x))


# ----------------------------- kernel 1: LSTM recurrence -----------------------------
def lstm_kernel(obs_ref, act_ref,
                wo_ref, bo_ref, wa_ref, ba_ref,
                wih_o_ref, wih_a_ref, whh_ref, blstm_ref,
                hseq_ref, h_ref, c_ref):
    t = pl.program_id(0)
    hid = h_ref.shape[1]

    @pl.when(t == 0)
    def _init():                       # hiddenInitialize(): zeros
        h_ref[...] = jnp.zeros_like(h_ref)
        c_ref[...] = jnp.zeros_like(c_ref)

    obs = obs_ref[0]                   # (B, F)
    act = act_ref[0]                   # (B, A) one-hot
    post_obs = jnp.dot(obs, wo_ref[...], preferred_element_type=jnp.float32) + bo_ref[...]
    post_act = jnp.dot(act, wa_ref[...], preferred_element_type=jnp.float32) + ba_ref[...]

    h_prev = h_ref[...]
    c_prev = c_ref[...]
    # cat(post_obs, post_act) @ W_ih.T == post_obs @ Wih_o + post_act @ Wih_a
    gates = (jnp.dot(post_obs, wih_o_ref[...], preferred_element_type=jnp.float32)
             + jnp.dot(post_act, wih_a_ref[...], preferred_element_type=jnp.float32)
             + jnp.dot(h_prev, whh_ref[...], preferred_element_type=jnp.float32)
             + blstm_ref[...])
    i_g = _sigmoid(gates[:, 0 * hid:1 * hid])
    f_g = _sigmoid(gates[:, 1 * hid:2 * hid])
    g_g = jnp.tanh(gates[:, 2 * hid:3 * hid])
    o_g = _sigmoid(gates[:, 3 * hid:4 * hid])
    c_new = f_g * c_prev + i_g * g_g
    h_new = o_g * jnp.tanh(c_new)
    h_ref[...] = h_new
    c_ref[...] = c_new
    hseq_ref[0] = h_new                # per-step hidden state -> (T, B, hid) output


# ----------------------------- kernel 2: generator (per time step, parallel) ---------
def make_gen_kernel(cfgs, B, ohw_final, bias=0.1):
    """cfgs: per layer (J=in HW, KK=K*K, O=out HW, C=out channels, has_scatter)."""

    def kernel(*refs):
        pos = 0
        h_ref = refs[pos]; pos += 1
        layer_param_refs = []
        for (J, KK, O, C, has_s) in cfgs:
            if has_s:
                w_ref, s_ref, g_ref, b_ref = refs[pos:pos + 4]; pos += 4
            else:
                w_ref, g_ref, b_ref = refs[pos:pos + 3]; s_ref = None; pos += 3
            layer_param_refs.append((w_ref, s_ref, g_ref, b_ref))
        wf_ref = refs[pos]; pos += 1
        out_ref = refs[pos]; pos += 1
        scratch = refs[pos:]

        x = h_ref[0]                                           # (B, hid) f32
        si = 0
        for (J, KK, O, C, has_s), (w_ref, s_ref, g_ref, b_ref) in zip(cfgs, layer_param_refs):
            # ---- ConvTranspose2d: one stacked weight matmul (+ one scatter matmul / b) ----
            y = jnp.dot(x.astype(jnp.bfloat16), w_ref[...],
                        preferred_element_type=jnp.float32)    # (B*J, KK*C)
            if has_s:
                yr_ref = scratch[si]; acc_ref = scratch[si + 1]; si += 2
                s_mat = s_ref[...]                             # (O, KK*J) 0/1 bf16
                for b in range(B):
                    # regroup columns (k, c) into rows (k, j) via cheap block stores
                    for k in range(KK):
                        yr_ref[k * J:(k + 1) * J, :] = y[b * J:(b + 1) * J, k * C:(k + 1) * C]
                    acc_ref[b * O:(b + 1) * O, :] = jnp.dot(
                        s_mat, yr_ref[...].astype(jnp.bfloat16),
                        preferred_element_type=jnp.float32)
            else:
                # layer 0 (1x1 spatial input): the scatter is the identity -> direct placement
                acc_ref = scratch[si]; si += 1
                for b in range(B):
                    for k in range(KK):
                        acc_ref[b * O + k:b * O + k + 1, :] = y[b:b + 1, k * C:(k + 1) * C]

            # ---- BatchNorm2d (per-call batch statistics) + Softplus ----
            a = acc_ref[...]                                   # (B*O, C) f32
            mean = jnp.mean(a, axis=0, keepdims=True)
            var = jnp.mean(a * a, axis=0, keepdims=True) - mean * mean
            inv_std = jax.lax.rsqrt(var + 1e-5)
            scale = g_ref[...] * inv_std
            shift = b_ref[...] - mean * scale
            x = _softplus(a * scale + shift)                   # (B*O, C) f32

        # ---- final 1x1 Conv2d(ngf -> 1), Softplus, heatmap normalisation ----
        v = jnp.sum(x * wf_ref[...], axis=-1, keepdims=True)   # (B*OHW, 1) lane reduce
        heat = _softplus(v) + bias
        for b in range(B):
            hb = heat[b * ohw_final:(b + 1) * ohw_final, :]
            denom = jnp.sum(hb, axis=0, keepdims=True)         # (1, 1)
            out_ref[0, b * ohw_final:(b + 1) * ohw_final, :] = (
                hb * pl.reciprocal(denom, approx=True))

    return kernel


# ----------------------------- host-side constants (glue) -----------------------------
def build_scatter_comb(in_hw, out_hw, K, stride, pad):
    """(OH*OW, K*K*H*W) 0/1 matrix; columns ordered kernel-position-major, pixel-minor."""
    blocks = []
    for kh in range(K):
        for kw in range(K):
            S = np.zeros((out_hw * out_hw, in_hw * in_hw), np.float32)
            for ih in range(in_hw):
                oh = ih * stride - pad + kh
                if oh < 0 or oh >= out_hw:
                    continue
                for iw in range(in_hw):
                    ow = iw * stride - pad + kw
                    if ow < 0 or ow >= out_hw:
                        continue
                    S[oh * out_hw + ow, ih * in_hw + iw] = 1.0
            blocks.append(S)
    return np.concatenate(blocks, axis=1)


def init_params(key, F, A, up, B):
    hid, ngf = 64, 32
    ch = [ngf * 2 ** (up - i - 1) for i in range(up)]
    rngs = iter(jax.random.split(key, 16 + 8 * up))

    def nrm(shape, scale):
        return scale * jax.random.normal(next(rngs), shape, dtype=jnp.float32)

    def q_bf16(x):                     # snap to the bf16 grid (kernel uses bf16 weights exactly)
        return x.astype(jnp.bfloat16).astype(jnp.float32)

    p = {"_raw": {}}
    # LSTMNet: obs_layer, action_layer (torch Linear: y = x W^T + b), 1-layer LSTM(20 -> 64)
    w_obs = nrm((10, F), 1.0 / np.sqrt(F)); b_obs = nrm((10,), 0.1)
    w_act = nrm((10, A), 1.0 / np.sqrt(A)); b_act = nrm((10,), 0.1)
    w_ih = nrm((4 * hid, 20), 1.0 / np.sqrt(20))
    w_hh = nrm((4 * hid, hid), 1.0 / np.sqrt(hid))
    b_ih = nrm((4 * hid,), 0.1); b_hh = nrm((4 * hid,), 0.1)

    p["w_obs"] = w_obs.T; p["b_obs"] = b_obs[None, :]
    p["w_act"] = w_act.T; p["b_act"] = b_act[None, :]
    p["w_ih_obs"] = w_ih[:, :10].T          # (10, 4*hid)
    p["w_ih_act"] = w_ih[:, 10:].T          # (10, 4*hid)
    p["w_hh"] = w_hh.T                      # (hid, 4*hid)
    p["b_lstm"] = (b_ih + b_hh)[None, :]
    p["_raw"].update(dict(w_obs=w_obs, b_obs=b_obs, w_act=w_act, b_act=b_act,
                          w_ih=w_ih, w_hh=w_hh, b_ih=b_ih, b_hh=b_hh))

    # Generator(belief_dim=64, up): stacked ConvT weights + combined per-batch scatters
    prev_c, in_hw = hid, 1
    layer_cfg = []
    for li in range(up):
        c_out = ch[li]
        K, stride, pad = (5, 1, 0) if li == 0 else (4, 2, 1)
        out_hw = (in_hw - 1) * stride - 2 * pad + K
        KK = K * K
        w = q_bf16(nrm((prev_c, c_out, K, K), 0.5 / np.sqrt(prev_c * K * K)))  # ConvT (Cin,Cout,K,K)
        gamma = 1.0 + nrm((c_out,), 0.1)
        beta = nrm((c_out,), 0.1)
        # (Cin, Cout, K, K) -> (Cin, KK*Cout) with column index = k*Cout + c, k = kh*K + kw
        w_stack = (jnp.transpose(w, (2, 3, 0, 1)).reshape(KK, prev_c, c_out)
                   .transpose(1, 0, 2).reshape(prev_c, KK * c_out))
        p[f"gen_w{li}"] = w_stack.astype(jnp.bfloat16)
        has_scatter = li > 0                # layer 0: 1x1 input -> scatter is the identity
        if has_scatter:
            p[f"gen_s{li}"] = jnp.asarray(
                build_scatter_comb(in_hw, out_hw, K, stride, pad)).astype(jnp.bfloat16)
        p[f"gen_gamma{li}"] = gamma[None, :]
        p[f"gen_beta{li}"] = beta[None, :]
        p["_raw"][f"conv{li}"] = w
        p["_raw"][f"gamma{li}"] = gamma
        p["_raw"][f"beta{li}"] = beta
        layer_cfg.append((in_hw * in_hw, KK, out_hw * out_hw, c_out, has_scatter))
        prev_c, in_hw = c_out, out_hw

    wf = nrm((1, ngf, 1, 1), 0.5 / np.sqrt(ngf))        # final 1x1 Conv2d
    p["w_final"] = wf[:, :, 0, 0]                       # (1, ngf)
    p["_raw"]["wf"] = wf
    p["layer_cfg"] = layer_cfg
    p["out_hw"] = in_hw
    return p


# ----------------------------- wrapper -----------------------------
def generator_predict_forward(obs, action_idx, params, up):
    B, T, F = obs.shape
    A = params["w_act"].shape[0]
    hid = 64
    cfgs = params["layer_cfg"]
    ohw = params["out_hw"] ** 2

    # encoded_action = eye(action_dim)[action]  (host-side glue, like torch.eye indexing)
    act_onehot = jax.nn.one_hot(action_idx[..., 0], A, dtype=jnp.float32)  # (B, T, A)
    obs_t = jnp.transpose(obs, (1, 0, 2)).astype(jnp.float32)              # (T, B, F)
    act_t = jnp.transpose(act_onehot, (1, 0, 2))                           # (T, B, A)

    # ---------- phase 1: LSTM recurrence (sequential grid, h/c carried in scratch) ----------
    lstm_inputs = [obs_t, act_t,
                   params["w_obs"], params["b_obs"], params["w_act"], params["b_act"],
                   params["w_ih_obs"], params["w_ih_act"], params["w_hh"], params["b_lstm"]]
    lstm_specs = [pl.BlockSpec((1, B, F), lambda t: (t, 0, 0)),
                  pl.BlockSpec((1, B, A), lambda t: (t, 0, 0))]
    for prm in lstm_inputs[2:]:
        lstm_specs.append(pl.BlockSpec(prm.shape, lambda t, nd=prm.ndim: (0,) * nd))

    hseq = pl.pallas_call(
        lstm_kernel,
        out_shape=jax.ShapeDtypeStruct((T, B, hid), jnp.float32),
        grid_spec=pltpu.PrefetchScalarGridSpec(
            num_scalar_prefetch=0, grid=(T,),
            in_specs=lstm_specs,
            out_specs=pl.BlockSpec((1, B, hid), lambda t: (t, 0, 0)),
            scratch_shapes=[pltpu.VMEM((B, hid), jnp.float32),   # h (carried over grid)
                            pltpu.VMEM((B, hid), jnp.float32)]), # c
        compiler_params=pltpu.CompilerParams(dimension_semantics=("arbitrary",)),
    )(*lstm_inputs)

    # ---------- phase 2: generator, one independent grid step per time step ----------
    gen_inputs = [hseq]
    for li, (J, KK, O, C, has_s) in enumerate(cfgs):
        gen_inputs.append(params[f"gen_w{li}"])
        if has_s:
            gen_inputs.append(params[f"gen_s{li}"])
        gen_inputs += [params[f"gen_gamma{li}"], params[f"gen_beta{li}"]]
    gen_inputs.append(params["w_final"])

    gen_specs = [pl.BlockSpec((1, B, hid), lambda t: (t, 0, 0))]
    for prm in gen_inputs[1:]:
        gen_specs.append(pl.BlockSpec(prm.shape, lambda t, nd=prm.ndim: (0,) * nd))

    scratch = []
    for (J, KK, O, C, has_s) in cfgs:
        if has_s:
            scratch.append(pltpu.VMEM((KK * J, C), jnp.float32))   # regrouped Y for one batch elem
        scratch.append(pltpu.VMEM((B * O, C), jnp.float32))        # ConvT output accumulator

    out = pl.pallas_call(
        make_gen_kernel(cfgs, B, ohw),
        out_shape=jax.ShapeDtypeStruct((T, B * ohw, 1), jnp.float32),
        grid_spec=pltpu.PrefetchScalarGridSpec(
            num_scalar_prefetch=0, grid=(T,),
            in_specs=gen_specs,
            out_specs=pl.BlockSpec((1, B * ohw, 1), lambda t: (t, 0, 0)),
            scratch_shapes=scratch),
        compiler_params=pltpu.CompilerParams(dimension_semantics=("parallel",)),
    )(*gen_inputs)

    out = out[:, :, 0].reshape(T, B, ohw)        # glue: unpack batch-major rows
    return jnp.transpose(out, (1, 0, 2))         # (B, T, 25 * 2**((up-1)*2))


# ----------------------------- pure numpy reference -----------------------------
def reference_forward(obs, action_idx, params, up):
    raw = {k: np.asarray(v, dtype=np.float64) for k, v in params["_raw"].items()}
    obs = np.asarray(obs, np.float64)
    B, T, _ = obs.shape
    A = raw["w_act"].shape[1]
    hid = 64
    eye = np.eye(A)
    h = np.zeros((B, hid)); c = np.zeros((B, hid))
    out_hw = 5 * 2 ** (up - 1)
    all_pred = np.zeros((B, T, out_hw * out_hw))

    def softplus(x):
        return np.where(x > 20.0, x, np.log1p(np.exp(np.minimum(x, 20.0))))

    def sigmoid(x):
        return 1.0 / (1.0 + np.exp(-x))

    for t in range(T):
        o_t = obs[:, t, :]
        a_t = eye[np.asarray(action_idx)[:, t, 0]]
        post_obs = o_t @ raw["w_obs"].T + raw["b_obs"]
        post_act = a_t @ raw["w_act"].T + raw["b_act"]
        lstm_in = np.concatenate([post_obs, post_act], axis=-1)
        gates = lstm_in @ raw["w_ih"].T + raw["b_ih"] + h @ raw["w_hh"].T + raw["b_hh"]
        i_g = sigmoid(gates[:, :hid]); f_g = sigmoid(gates[:, hid:2 * hid])
        g_g = np.tanh(gates[:, 2 * hid:3 * hid]); o_g = sigmoid(gates[:, 3 * hid:])
        c = f_g * c + i_g * g_g
        h = o_g * np.tanh(c)

        x = h[:, :, None, None]
        in_hw = 1
        for li in range(up):
            w = raw[f"conv{li}"]
            c_out = w.shape[1]
            K, stride, pad = (5, 1, 0) if li == 0 else (4, 2, 1)
            oh_sz = (in_hw - 1) * stride - 2 * pad + K
            out = np.zeros((B, c_out, oh_sz, oh_sz))
            for ih in range(in_hw):
                for iw in range(in_hw):
                    contrib = np.einsum('bi,iokl->bokl', x[:, :, ih, iw], w)
                    for kh in range(K):
                        oh = ih * stride - pad + kh
                        if oh < 0 or oh >= oh_sz:
                            continue
                        for kw in range(K):
                            ow = iw * stride - pad + kw
                            if ow < 0 or ow >= oh_sz:
                                continue
                            out[:, :, oh, ow] += contrib[:, :, kh, kw]
            mean = out.mean(axis=(0, 2, 3), keepdims=True)
            var = out.var(axis=(0, 2, 3), keepdims=True)
            out = (out - mean) / np.sqrt(var + 1e-5)
            out = out * raw[f"gamma{li}"][None, :, None, None] + raw[f"beta{li}"][None, :, None, None]
            x = softplus(out)
            in_hw = oh_sz

        wf = raw["wf"][0, :, 0, 0]
        heat = softplus(np.einsum('bchw,c->bhw', x, wf)) + 0.1
        heat = heat / heat.sum(axis=(-1, -2), keepdims=True)
        all_pred[:, t, :] = heat.reshape(B, -1)
    return all_pred


# ----------------------------- main -----------------------------
if __name__ == "__main__":
    B, T, F, A, up = 2, 4, 6, 4, 2          # feature_dim=6, 4 directions, up=2 -> 10x10 maps
    key = jax.random.PRNGKey(0)
    k_obs, k_act, k_par = jax.random.split(key, 3)
    obs = jax.random.normal(k_obs, (B, T, F), dtype=jnp.float32)
    action = jax.random.randint(k_act, (B, T, 1), 0, A, dtype=jnp.int32)
    params = init_params(k_par, F, A, up, B)

    out = generator_predict_forward(obs, action, params, up)
    out = jax.block_until_ready(out)
    assert out.shape == (B, T, 25 * 2 ** ((up - 1) * 2))

    ref = reference_forward(np.asarray(obs), np.asarray(action), params, up)
    # bf16 MXU operands (weights snapped to the bf16 grid, activations cast at the dots)
    # with f32 accumulation -> slightly looser tolerance than a pure-f32 run.
    np.testing.assert_allclose(np.asarray(out), ref, rtol=4e-2, atol=3e-4)
    print("KERNEL_OK")
</pallas_src>

<mosaic_0001>
module attributes {stable_mosaic.version = 11 : i64} {
  func.func @lstm_kernel(%arg0: i32, %arg1: memref<1x2x6xf32, #tpu.memory_space<vmem>>, %arg2: memref<1x2x4xf32, #tpu.memory_space<vmem>>, %arg3: memref<6x10xf32, #tpu.memory_space<vmem>>, %arg4: memref<1x10xf32, #tpu.memory_space<vmem>>, %arg5: memref<4x10xf32, #tpu.memory_space<vmem>>, %arg6: memref<1x10xf32, #tpu.memory_space<vmem>>, %arg7: memref<10x256xf32, #tpu.memory_space<vmem>>, %arg8: memref<10x256xf32, #tpu.memory_space<vmem>>, %arg9: memref<64x256xf32, #tpu.memory_space<vmem>>, %arg10: memref<1x256xf32, #tpu.memory_space<vmem>>, %arg11: memref<1x2x64xf32, #tpu.memory_space<vmem>>, %arg12: memref<2x64xf32, #tpu.memory_space<vmem>>, %arg13: memref<2x64xf32, #tpu.memory_space<vmem>>) attributes {dimension_semantics = [#tpu.dimension_semantics<arbitrary>], iteration_bounds = array<i64: 4>, scalar_prefetch = 0 : i64, scratch_operands = 2 : i64, tpu.core_type = #tpu.core_type<tc>, window_params = [{transform_indices = @transform_0, window_bounds = array<i64: 1, 2, 6>}, {transform_indices = @transform_1, window_bounds = array<i64: 1, 2, 4>}, {pipeline_mode = #tpu.pipeline_mode<synchronous>, transform_indices = @transform_2, window_bounds = array<i64: 6, 10>}, {pipeline_mode = #tpu.pipeline_mode<synchronous>, transform_indices = @transform_3, window_bounds = array<i64: 1, 10>}, {pipeline_mode = #tpu.pipeline_mode<synchronous>, transform_indices = @transform_4, window_bounds = array<i64: 4, 10>}, {pipeline_mode = #tpu.pipeline_mode<synchronous>, transform_indices = @transform_5, window_bounds = array<i64: 1, 10>}, {pipeline_mode = #tpu.pipeline_mode<synchronous>, transform_indices = @transform_6, window_bounds = array<i64: 10, 256>}, {pipeline_mode = #tpu.pipeline_mode<synchronous>, transform_indices = @transform_7, window_bounds = array<i64: 10, 256>}, {pipeline_mode = #tpu.pipeline_mode<synchronous>, transform_indices = @transform_8, window_bounds = array<i64: 64, 256>}, {pipeline_mode = #tpu.pipeline_mode<synchronous>, transform_indices = @transform_9, window_bounds = array<i64: 1, 256>}, {transform_indices = @transform_10, window_bounds = array<i64: 1, 2, 64>}]} {
    %c0_i32 = arith.constant 0 : i32
    %0 = arith.cmpi eq, %arg0, %c0_i32 : i32
    %1 = arith.extui %0 : i1 to i32
    %c0_i32_0 = arith.constant 0 : i32
    %2 = arith.cmpi ne, %1, %c0_i32_0 : i32
    scf.if %2 {
      %cst_46 = arith.constant 0.000000e+00 : f32
      %66 = vector.broadcast %cst_46 : f32 to vector<2x64xf32>
      %c0_47 = arith.constant 0 : index
      %c0_48 = arith.constant 0 : index
      %67 = vector.load %arg12[%c0_47, %c0_48] : memref<2x64xf32, #tpu.memory_space<vmem>>, vector<2x64xf32>
      tpu.vector_store %arg12[%c0_47, %c0_48], %66 {strides = array<i32>} : memref<2x64xf32, #tpu.memory_space<vmem>>, vector<2x64xf32>,
      %cst_49 = arith.constant 0.000000e+00 : f32
      %68 = vector.broadcast %cst_49 : f32 to vector<2x64xf32>
      %c0_50 = arith.constant 0 : index
      %c0_51 = arith.constant 0 : index
      %69 = vector.load %arg13[%c0_50, %c0_51] : memref<2x64xf32, #tpu.memory_space<vmem>>, vector<2x64xf32>
      tpu.vector_store %arg13[%c0_50, %c0_51], %68 {strides = array<i32>} : memref<2x64xf32, #tpu.memory_space<vmem>>, vector<2x64xf32>,
    } else {
    }
    %c0 = arith.constant 0 : index
    %c0_1 = arith.constant 0 : index
    %c0_2 = arith.constant 0 : index
    %3 = vector.load %arg1[%c0, %c0_1, %c0_2] : memref<1x2x6xf32, #tpu.memory_space<vmem>>, vector<1x2x6xf32>
    %4 = vector.shape_cast %3 : vector<1x2x6xf32> to vector<2x6xf32>
    %c0_3 = arith.constant 0 : index
    %c0_4 = arith.constant 0 : index
    %c0_5 = arith.constant 0 : index
    %5 = vector.load %arg2[%c0_3, %c0_4, %c0_5] : memref<1x2x4xf32, #tpu.memory_space<vmem>>, vector<1x2x4xf32>
    %6 = vector.shape_cast %5 : vector<1x2x4xf32> to vector<2x4xf32>
    %c0_6 = arith.constant 0 : index
    %c0_7 = arith.constant 0 : index
    %7 = vector.load %arg3[%c0_6, %c0_7] : memref<6x10xf32, #tpu.memory_space<vmem>>, vector<6x10xf32>
    %cst = arith.constant dense<0.000000e+00> : vector<2x10xf32>
    %8 = tpu.matmul %4, %7, %cst {dimension_numbers = #tpu.dot_dimension_numbers<[1], [0], [0], [1], [0, 0, 1, 1], [], []>} : vector<2x6xf32>, vector<6x10xf32>, vector<2x10xf32> -> vector<2x10xf32>
    %c0_8 = arith.constant 0 : index
    %c0_9 = arith.constant 0 : index
    %9 = vector.load %arg4[%c0_8, %c0_9] : memref<1x10xf32, #tpu.memory_space<vmem>>, vector<1x10xf32>
    %10 = vector.broadcast %9 : vector<1x10xf32> to vector<2x10xf32>
    %11 = arith.addf %8, %10 : vector<2x10xf32>
    %c0_10 = arith.constant 0 : index
    %c0_11 = arith.constant 0 : index
    %12 = vector.load %arg5[%c0_10, %c0_11] : memref<4x10xf32, #tpu.memory_space<vmem>>, vector<4x10xf32>
    %cst_12 = arith.constant dense<0.000000e+00> : vector<2x10xf32>
    %13 = tpu.matmul %6, %12, %cst_12 {dimension_numbers = #tpu.dot_dimension_numbers<[1], [0], [0], [1], [0, 0, 1, 1], [], []>} : vector<2x4xf32>, vector<4x10xf32>, vector<2x10xf32> -> vector<2x10xf32>
    %c0_13 = arith.constant 0 : index
    %c0_14 = arith.constant 0 : index
    %14 = vector.load %arg6[%c0_13, %c0_14] : memref<1x10xf32, #tpu.memory_space<vmem>>, vector<1x10xf32>
    %15 = vector.broadcast %14 : vector<1x10xf32> to vector<2x10xf32>
    %16 = arith.addf %13, %15 : vector<2x10xf32>
    %c0_15 = arith.constant 0 : index
    %c0_16 = arith.constant 0 : index
    %17 = vector.load %arg12[%c0_15, %c0_16] : memref<2x64xf32, #tpu.memory_space<vmem>>, vector<2x64xf32>
    %c0_17 = arith.constant 0 : index
    %c0_18 = arith.constant 0 : index
    %18 = vector.load %arg13[%c0_17, %c0_18] : memref<2x64xf32, #tpu.memory_space<vmem>>, vector<2x64xf32>
    %c0_19 = arith.constant 0 : index
    %c0_20 = arith.constant 0 : index
    %19 = vector.load %arg7[%c0_19, %c0_20] : memref<10x256xf32, #tpu.memory_space<vmem>>, vector<10x256xf32>
    %cst_21 = arith.constant dense<0.000000e+00> : vector<2x256xf32>
    %20 = tpu.matmul %11, %19, %cst_21 {dimension_numbers = #tpu.dot_dimension_numbers<[1], [0], [0], [1], [0, 0, 1, 1], [], []>} : vector<2x10xf32>, vector<10x256xf32>, vector<2x256xf32> -> vector<2x256xf32>
    %c0_22 = arith.constant 0 : index
    %c0_23 = arith.constant 0 : index
    %21 = vector.load %arg8[%c0_22, %c0_23] : memref<10x256xf32, #tpu.memory_space<vmem>>, vector<10x256xf32>
    %cst_24 = arith.constant dense<0.000000e+00> : vector<2x256xf32>
    %22 = tpu.matmul %16, %21, %cst_24 {dimension_numbers = #tpu.dot_dimension_numbers<[1], [0], [0], [1], [0, 0, 1, 1], [], []>} : vector<2x10xf32>, vector<10x256xf32>, vector<2x256xf32> -> vector<2x256xf32>
    %23 = arith.addf %20, %22 : vector<2x256xf32>
    %c0_25 = arith.constant 0 : index
    %c0_26 = arith.constant 0 : index
    %24 = vector.load %arg9[%c0_25, %c0_26] : memref<64x256xf32, #tpu.memory_space<vmem>>, vector<64x256xf32>
    %cst_27 = arith.constant dense<0.000000e+00> : vector<2x256xf32>
    %25 = tpu.matmul %17, %24, %cst_27 {dimension_numbers = #tpu.dot_dimension_numbers<[1], [0], [0], [1], [0, 0, 1, 1], [], []>} : vector<2x64xf32>, vector<64x256xf32>, vector<2x256xf32> -> vector<2x256xf32>
    %26 = arith.addf %23, %25 : vector<2x256xf32>
    %c0_28 = arith.constant 0 : index
    %c0_29 = arith.constant 0 : index
    %27 = vector.load %arg10[%c0_28, %c0_29] : memref<1x256xf32, #tpu.memory_space<vmem>>, vector<1x256xf32>
    %28 = vector.broadcast %27 : vector<1x256xf32> to vector<2x256xf32>
    %29 = arith.addf %26, %28 : vector<2x256xf32>
    %30 = vector.extract_strided_slice %29 {offsets = [0, 0], sizes = [2, 64], strides = [1, 1]} : vector<2x256xf32> to vector<2x64xf32>
    %cst_30 = arith.constant 0.000000e+00 : f32
    %31 = vector.broadcast %cst_30 : f32 to vector<2x64xf32>
    %32 = arith.subf %31, %30 : vector<2x64xf32>
    %33 = math.exp %32 : vector<2x64xf32>
    %cst_31 = arith.constant 1.000000e+00 : f32
    %34 = vector.broadcast %cst_31 : f32 to vector<2x64xf32>
    %35 = arith.addf %34, %33 : vector<2x64xf32>
    %cst_32 = arith.constant 1.000000e+00 : f32
    %36 = vector.broadcast %cst_32 : f32 to vector<2x64xf32>
    %37 = arith.divf %36, %35 : vector<2x64xf32>
    %38 = vector.extract_strided_slice %29 {offsets = [0, 64], sizes = [2, 64], strides = [1, 1]} : vector<2x256xf32> to vector<2x64xf32>
    %cst_33 = arith.constant 0.000000e+00 : f32
    %39 = vector.broadcast %cst_33 : f32 to vector<2x64xf32>
    %40 = arith.subf %39, %38 : vector<2x64xf32>
    %41 = math.exp %40 : vector<2x64xf32>
    %cst_34 = arith.constant 1.000000e+00 : f32
    %42 = vector.broadcast %cst_34 : f32 to vector<2x64xf32>
    %43 = arith.addf %42, %41 : vector<2x64xf32>
    %cst_35 = arith.constant 1.000000e+00 : f32
    %44 = vector.broadcast %cst_35 : f32 to vector<2x64xf32>
    %45 = arith.divf %44, %43 : vector<2x64xf32>
    %46 = vector.extract_strided_slice %29 {offsets = [0, 128], sizes = [2, 64], strides = [1, 1]} : vector<2x256xf32> to vector<2x64xf32>
    %47 = math.tanh %46 : vector<2x64xf32>
    %48 = vector.extract_strided_slice %29 {offsets = [0, 192], sizes = [2, 64], strides = [1, 1]} : vector<2x256xf32> to vector<2x64xf32>
    %cst_36 = arith.constant 0.000000e+00 : f32
    %49 = vector.broadcast %cst_36 : f32 to vector<2x64xf32>
    %50 = arith.subf %49, %48 : vector<2x64xf32>
    %51 = math.exp %50 : vector<2x64xf32>
    %cst_37 = arith.constant 1.000000e+00 : f32
    %52 = vector.broadcast %cst_37 : f32 to vector<2x64xf32>
    %53 = arith.addf %52, %51 : vector<2x64xf32>
    %cst_38 = arith.constant 1.000000e+00 : f32
    %54 = vector.broadcast %cst_38 : f32 to vector<2x64xf32>
    %55 = arith.divf %54, %53 : vector<2x64xf32>
    %56 = arith.mulf %45, %18 : vector<2x64xf32>
    %57 = arith.mulf %37, %47 : vector<2x64xf32>
    %58 = arith.addf %56, %57 : vector<2x64xf32>
    %59 = math.tanh %58 : vector<2x64xf32>
    %60 = arith.mulf %55, %59 : vector<2x64xf32>
    %c0_39 = arith.constant 0 : index
    %c0_40 = arith.constant 0 : index
    %61 = vector.load %arg12[%c0_39, %c0_40] : memref<2x64xf32, #tpu.memory_space<vmem>>, vector<2x64xf32>
    tpu.vector_store %arg12[%c0_39, %c0_40], %60 {strides = array<i32>} : memref<2x64xf32, #tpu.memory_space<vmem>>, vector<2x64xf32>,
    %c0_41 = arith.constant 0 : index
    %c0_42 = arith.constant 0 : index
    %62 = vector.load %arg13[%c0_41, %c0_42] : memref<2x64xf32, #tpu.memory_space<vmem>>, vector<2x64xf32>
    tpu.vector_store %arg13[%c0_41, %c0_42], %58 {strides = array<i32>} : memref<2x64xf32, #tpu.memory_space<vmem>>, vector<2x64xf32>,
    %c0_43 = arith.constant 0 : index
    %c0_44 = arith.constant 0 : index
    %c0_45 = arith.constant 0 : index
    %63 = vector.load %arg11[%c0_43, %c0_44, %c0_45] : memref<1x2x64xf32, #tpu.memory_space<vmem>>, vector<1x2x64xf32>
    %64 = vector.shape_cast %63 : vector<1x2x64xf32> to vector<2x64xf32>
    %65 = vector.shape_cast %60 : vector<2x64xf32> to vector<1x2x64xf32>
    tpu.vector_store %arg11[%c0_43, %c0_44, %c0_45], %65 {strides = array<i32>} : memref<1x2x64xf32, #tpu.memory_space<vmem>>, vector<1x2x64xf32>,
    return
  }
  func.func @transform_0(%arg0: i32) -> (i32, i32, i32) {
    %c0_i32 = arith.constant 0 : i32
    %c0_i32_0 = arith.constant 0 : i32
    %c0_i32_1 = arith.constant 0 : i32
    return %arg0, %c0_i32, %c0_i32_0 : i32, i32, i32
  }
  func.func @transform_1(%arg0: i32) -> (i32, i32, i32) {
    %c0_i32 = arith.constant 0 : i32
    %c0_i32_0 = arith.constant 0 : i32
    %c0_i32_1 = arith.constant 0 : i32
    return %arg0, %c0_i32, %c0_i32_0 : i32, i32, i32
  }
  func.func @transform_2(%arg0: i32) -> (i32, i32) {
    %c0_i32 = arith.constant 0 : i32
    %c0_i32_0 = arith.constant 0 : i32
    %c0_i32_1 = arith.constant 0 : i32
    return %c0_i32, %c0_i32_0 : i32, i32
  }
  func.func @transform_3(%arg0: i32) -> (i32, i32) {
    %c0_i32 = arith.constant 0 : i32
    %c0_i32_0 = arith.constant 0 : i32
    %c0_i32_1 = arith.constant 0 : i32
    return %c0_i32, %c0_i32_0 : i32, i32
  }
  func.func @transform_4(%arg0: i32) -> (i32, i32) {
    %c0_i32 = arith.constant 0 : i32
    %c0_i32_0 = arith.constant 0 : i32
    %c0_i32_1 = arith.constant 0 : i32
    return %c0_i32, %c0_i32_0 : i32, i32
  }
  func.func @transform_5(%arg0: i32) -> (i32, i32) {
    %c0_i32 = arith.constant 0 : i32
    %c0_i32_0 = arith.constant 0 : i32
    %c0_i32_1 = arith.constant 0 : i32
    return %c0_i32, %c0_i32_0 : i32, i32
  }
  func.func @transform_6(%arg0: i32) -> (i32, i32) {
    %c0_i32 = arith.constant 0 : i32
    %c0_i32_0 = arith.constant 0 : i32
    %c0_i32_1 = arith.constant 0 : i32
    return %c0_i32, %c0_i32_0 : i32, i32
  }
  func.func @transform_7(%arg0: i32) -> (i32, i32) {
    %c0_i32 = arith.constant 0 : i32
    %c0_i32_0 = arith.constant 0 : i32
    %c0_i32_1 = arith.constant 0 : i32
    return %c0_i32, %c0_i32_0 : i32, i32
  }
  func.func @transform_8(%arg0: i32) -> (i32, i32) {
    %c0_i32 = arith.constant 0 : i32
    %c0_i32_0 = arith.constant 0 : i32
    %c0_i32_1 = arith.constant 0 : i32
    return %c0_i32, %c0_i32_0 : i32, i32
  }
  func.func @transform_9(%arg0: i32) -> (i32, i32) {
    %c0_i32 = arith.constant 0 : i32
    %c0_i32_0 = arith.constant 0 : i32
    %c0_i32_1 = arith.constant 0 : i32
    return %c0_i32, %c0_i32_0 : i32, i32
  }
  func.func @transform_10(%arg0: i32) -> (i32, i32, i32) {
    %c0_i32 = arith.constant 0 : i32
    %c0_i32_0 = arith.constant 0 : i32
    %c0_i32_1 = arith.constant 0 : i32
    return %arg0, %c0_i32, %c0_i32_0 : i32, i32, i32
  }
}

</mosaic_0001>

<llo_original>
// kernel: tpu_custom_call.1
$region0: #{tpu_custom_call.1}
  #allocation0 [shape = 'u32[]', space=smem, size = 0x4, offset = 0x4, fixed_abs, tag = 'smem constant byte address 0x4 - core index']
  #allocation1 [shape = 'u32[144,128]{1,0:T(1,128)}', space=vmem, size = 0x12000, scoped, tag = 'internal scratch']
  #allocation2 [shape = 'f32[2,64]{1,0:T(2,128)}', space=vmem, size = 0x400, scoped, tag = 'scratch operand']
  #allocation3 [shape = 'f32[2,64]{1,0:T(2,128)}', space=vmem, size = 0x400, scoped, tag = 'scratch operand']
  %s0 = inlined_call_operand.hbm [shape: f32[4,2,6], index: 0, kind: input, shape index: {}]
  %s1 = inlined_call_operand.hbm [shape: f32[4,2,4], index: 1, kind: input, shape index: {}]
  %s2 = inlined_call_operand.hbm [shape: f32[6,10], index: 2, kind: input, shape index: {}]
  %s3 = inlined_call_operand.vmem [shape: f32[1,10], index: 3, kind: input, shape index: {}]
  %s4 = inlined_call_operand.vmem [shape: f32[4,10], index: 4, kind: input, shape index: {}]
  %s5 = inlined_call_operand.vmem [shape: f32[1,10], index: 5, kind: input, shape index: {}]
  %s6 = inlined_call_operand.hbm [shape: f32[10,256], index: 6, kind: input, shape index: {}]
  %s7 = inlined_call_operand.hbm [shape: f32[10,256], index: 7, kind: input, shape index: {}]
  %s8 = inlined_call_operand.hbm [shape: f32[64,256], index: 8, kind: input, shape index: {}]
  %s9 = inlined_call_operand.vmem [shape: f32[1,256], index: 9, kind: input, shape index: {}]
  %s10 = inlined_call_operand.hbm [shape: f32[4,2,64], index: 10, kind: output, shape index: {}]
  %s11 = sld [smem:[#allocation0]]
  $region101: #{tpu_custom_call.1} parent=0
    _
  %s13 = ssub.s32 1, %s11
  %s14 = scalar_select 0, %s13, %s11
  $region1: #{tpu_custom_call.1} parent=0
    #allocation4 [shape = 'u8[2048]{0}', space=vmem, size = 0x800, scoped, tag = 'input window, operand 0']
    #allocation5 [shape = 's32[2]{0}', space=sflag, size = 0x8, scoped, tag = 'scoped memory for tpu_custom_call.1']
    #allocation6 [shape = 's32[2]{0}', space=sflag, size = 0x8, scoped, tag = 'scoped memory for tpu_custom_call.1']
    #allocation7 [shape = 'u8[2048]{0}', space=vmem, size = 0x800, scoped, tag = 'input window, operand 1']
    #allocation8 [shape = 's32[2]{0}', space=sflag, size = 0x8, scoped, tag = 'scoped memory for tpu_custom_call.1']
    #allocation9 [shape = 'u8[4096]{0}', space=vmem, size = 0x1000, scoped, tag = 'input window, operand 2, single buffered']
    #allocation10 [shape = 'u8[16384]{0}', space=vmem, size = 0x4000, scoped, tag = 'input window, operand 6, single buffered']
    #allocation11 [shape = 's32[1]{0}', space=sflag, size = 0x4, scoped, tag = 'scoped memory for tpu_custom_call.1']
    #allocation12 [shape = 'u8[16384]{0}', space=vmem, size = 0x4000, scoped, tag = 'input window, operand 7, single buffered']
    #allocation13 [shape = 'u8[65536]{0}', space=vmem, size = 0x10000, scoped, tag = 'input window, operand 8, single buffered']
    #allocation14 [shape = 's32[1]{0}', space=sflag, size = 0x4, scoped, tag = 'scoped memory for tpu_custom_call.1']
    #allocation15 [shape = 'u8[2048]{0}', space=vmem, size = 0x800, scoped, tag = 'output window, operand 0']
    %15 = vsyncpa [#allocation5], 0
    %s16 = scalar_lea.sflag [#allocation5], 1
    %17 = vsyncpa %s16, 0
    %18 = vsyncpa [#allocation8], 0
    %s19 = scalar_lea.sflag [#allocation8], 1
    %20 = vsyncpa %s19, 0
    %21 = vsyncpa [#allocation11], 0
    %22 = vsyncpa [#allocation14], 0
    %23 = vsyncpa [#allocation6], 0
    %s24 = scalar_lea.sflag [#allocation6], 1
    %25 = vsyncpa %s24, 0
    loop: start=0, step=1, limit=6
    $region2: #{tpu_custom_call.1} parent=1 // loop_pre_header
      _
    $region3: #{tpu_custom_call.1} parent=1 // loop_header
      %s27 = sphi 0, %s31
      %p28 = scmp.ge.s32.totalorder %s27, 6
      %s37 = sphi 0, %s39
      %s40 = sphi 0, %s37
      %s41 = sphi 0, %s40
      %s57 = sphi 0, %s41
      %s63 = sphi 0, %s65
      %s66 = sphi 0, %s63
      %s67 = sphi 0, %s66
      %s83 = sphi 0, %s67
      %s87 = sphi 0, %s87
      %s89 = sphi 0, %s87
      %s90 = sphi 0, %s89
      %s104 = sphi 0, %s90
      %s108 = sphi 0, %s108
      %s110 = sphi 0, %s108
      %s111 = sphi 0, %s110
      %s125 = sphi 0, %s111
      %s129 = sphi 0, %s129
      %s131 = sphi 0, %s129
      %s132 = sphi 0, %s131
      %s146 = sphi 0, %s132
      %s150 = sphi 0, %s150
      %s152 = sphi 0, %s150
      %s153 = sphi 0, %s152
      %s167 = sphi 0, %s153
      %s171 = sphi 0, %s171
      %s173 = sphi 0, %s171
      %s174 = sphi 0, %s173
      %s188 = sphi 0, %s174
      %s192 = sphi 0, %s192
      %s194 = sphi 0, %s192
      %s195 = sphi 0, %s194
      %s209 = sphi 0, %s195
      %s213 = sphi 0, %s213
      %s215 = sphi 0, %s213
      %s216 = sphi 0, %s215
      %s230 = sphi 0, %s216
      %s234 = sphi 0, %s234
      %s236 = sphi 0, %s234
      %s237 = sphi 0, %s236
      %s251 = sphi 0, %s237
      %s257 = sphi 0, %s259
      %s260 = sphi 0, %s257
      %s261 = sphi 0, %s260
      %s277 = sphi 0, %s261
    $region4: #{tpu_custom_call.1} parent=1 // loop_header_branch
      %30 = sbr.rel (%p28) target = $region8
    $region5: #{tpu_custom_call.1} parent=1 // loop_body
      %s32 = ssub.s32 %s27, 1
      %s33 = ssub.s32 %s27, 2
      %s34 = sadd.s32 %s27, 1
      %s35 = ssub.s32 %s27, %s34
      %p36 = scmp.eq.s32.totalorder %s35, 0
      %s38 = sadd.s32 %s37, 1
      %s39 = scalar_select %p36, %s37, %s38
      %p42 = pneg %p36
      %p43 = scmp.eq.s32.totalorder %s27, 3
      %p44 = por %p42, %p43
      %p45 = scmp.ne.s32.totalorder %s37, %s40
      %p46 = scmp.eq.s32.totalorder %s27, 0
      %p47 = por %p45, %p46
      %p48 = scmp.ne.s32.totalorder %s37, %s40
      %p49 = scmp.eq.s32.totalorder %s32, 3
      %p50 = por %p48, %p49
      %p51 = scmp.ne.s32.totalorder %s40, %s41
      %p52 = scmp.eq.s32.totalorder %s32, 0
      %p53 = por %p51, %p52
      %p54 = scmp.ne.s32.totalorder %s40, %s41
      %p55 = scmp.eq.s32.totalorder %s33, 3
      %p56 = por %p54, %p55
      %p58 = scmp.ne.s32.totalorder %s41, %s57
      %p59 = scmp.eq.s32.totalorder %s33, 0
      %p60 = por %p58, %p59
      %s61 = ssub.s32 %s27, %s34
      %p62 = scmp.eq.s32.totalorder %s61, 0
      %s64 = sadd.s32 %s63, 1
      %s65 = scalar_select %p62, %s63, %s64
      %p68 = pneg %p62
      %p69 = scmp.eq.s32.totalorder %s27, 3
      %p70 = por %p68, %p69
      %p71 = scmp.ne.s32.totalorder %s63, %s66
      %p72 = scmp.eq.s32.totalorder %s27, 0
      %p73 = por %p71, %p72
      %p74 = scmp.ne.s32.totalorder %s63, %s66
      %p75 = scmp.eq.s32.totalorder %s32, 3
      %p76 = por %p74, %p75
      %p77 = scmp.ne.s32.totalorder %s66, %s67
      %p78 = scmp.eq.s32.totalorder %s32, 0
      %p79 = por %p77, %p78
      %p80 = scmp.ne.s32.totalorder %s66, %s67
      %p81 = scmp.eq.s32.totalorder %s33, 3
      %p82 = por %p80, %p81
      %p84 = scmp.ne.s32.totalorder %s67, %s83
      %p85 = scmp.eq.s32.totalorder %s33, 0
      %p86 = por %p84, %p85
      %s88 = sadd.s32 %s87, 1
      %p91 = scmp.eq.s32.totalorder %s27, 3
      %p92 = scmp.ne.s32.totalorder %s87, %s89
      %p93 = scmp.eq.s32.totalorder %s27, 0
      %p94 = por %p92, %p93
      %p95 = scmp.ne.s32.totalorder %s87, %s89
      %p96 = scmp.eq.s32.totalorder %s32, 3
      %p97 = por %p95, %p96
      %p98 = scmp.ne.s32.totalorder %s89, %s90
      %p99 = scmp.eq.s32.totalorder %s32, 0
      %p100 = por %p98, %p99
      %p101 = scmp.ne.s32.totalorder %s89, %s90
      %p102 = scmp.eq.s32.totalorder %s33, 3
      %p103 = por %p101, %p102
      %p105 = scmp.ne.s32.totalorder %s90, %s104
      %p106 = scmp.eq.s32.totalorder %s33, 0
      %p107 = por %p105, %p106
      %s109 = sadd.s32 %s108, 1
      %p112 = scmp.eq.s32.totalorder %s27, 3
      %p113 = scmp.ne.s32.totalorder %s108, %s110
      %p114 = scmp.eq.s32.totalorder %s27, 0
      %p115 = por %p113, %p114
      %p116 = scmp.ne.s32.totalorder %s108, %s110
      %p117 = scmp.eq.s32.totalorder %s32, 3
      %p118 = por %p116, %p117
      %p119 = scmp.ne.s32.totalorder %s110, %s111
      %p120 = scmp.eq.s32.totalorder %s32, 0
      %p121 = por %p119, %p120
      %p122 = scmp.ne.s32.totalorder %s110, %s111
      %p123 = scmp.eq.s32.totalorder %s33, 3
      %p124 = por %p122, %p123
      %p126 = scmp.ne.s32.totalorder %s111, %s125
      %p127 = scmp.eq.s32.totalorder %s33, 0
      %p128 = por %p126, %p127
      %s130 = sadd.s32 %s129, 1
      %p133 = scmp.eq.s32.totalorder %s27, 3
      %p134 = scmp.ne.s32.totalorder %s129, %s131
      %p135 = scmp.eq.s32.totalorder %s27, 0
      %p136 = por %p134, %p135
      %p137 = scmp.ne.s32.totalorder %s129, %s131
      %p138 = scmp.eq.s32.totalorder %s32, 3
      %p139 = por %p137, %p138
      %p140 = scmp.ne.s32.totalorder %s131, %s132
      %p141 = scmp.eq.s32.totalorder %s32, 0
      %p142 = por %p140, %p141
      %p143 = scmp.ne.s32.totalorder %s131, %s132
      %p144 = scmp.eq.s32.totalorder %s33, 3
      %p145 = por %p143, %p144
      %p147 = scmp.ne.s32.totalorder %s132, %s146
      %p148 = scmp.eq.s32.totalorder %s33, 0
      %p149 = por %p147, %p148
      %s151 = sadd.s32 %s150, 1
      %p154 = scmp.eq.s32.totalorder %s27, 3
      %p155 = scmp.ne.s32.totalorder %s150, %s152
      %p156 = scmp.eq.s32.totalorder %s27, 0
      %p157 = por %p155, %p156
      %p158 = scmp.ne.s32.totalorder %s150, %s152
      %p159 = scmp.eq.s32.totalorder %s32, 3
      %p160 = por %p158, %p159
      %p161 = scmp.ne.s32.totalorder %s152, %s153
      %p162 = scmp.eq.s32.totalorder %s32, 0
      %p163 = por %p161, %p162
      %p164 = scmp.ne.s32.totalorder %s152, %s153
      %p165 = scmp.eq.s32.totalorder %s33, 3
      %p166 = por %p164, %p165
      %p168 = scmp.ne.s32.totalorder %s153, %s167
      %p169 = scmp.eq.s32.totalorder %s33, 0
      %p170 = por %p168, %p169
      %s172 = sadd.s32 %s171, 1
      %p175 = scmp.eq.s32.totalorder %s27, 3
      %p176 = scmp.ne.s32.totalorder %s171, %s173
      %p177 = scmp.eq.s32.totalorder %s27, 0
      %p178 = por %p176, %p177
      %p179 = scmp.ne.s32.totalorder %s171, %s173
      %p180 = scmp.eq.s32.totalorder %s32, 3
      %p181 = por %p179, %p180
      %p182 = scmp.ne.s32.totalorder %s173, %s174
      %p183 = scmp.eq.s32.totalorder %s32, 0
      %p184 = por %p182, %p183
      %p185 = scmp.ne.s32.totalorder %s173, %s174
      %p186 = scmp.eq.s32.totalorder %s33, 3
      %p187 = por %p185, %p186
      %p189 = scmp.ne.s32.totalorder %s174, %s188
      %p190 = scmp.eq.s32.totalorder %s33, 0
      %p191 = por %p189, %p190
      %s193 = sadd.s32 %s192, 1
      %p196 = scmp.eq.s32.totalorder %s27, 3
      %p197 = scmp.ne.s32.totalorder %s192, %s194
      %p198 = scmp.eq.s32.totalorder %s27, 0
      %p199 = por %p197, %p198
      %p200 = scmp.ne.s32.totalorder %s192, %s194
      %p201 = scmp.eq.s32.totalorder %s32, 3
      %p202 = por %p200, %p201
      %p203 = scmp.ne.s32.totalorder %s194, %s195
      %p204 = scmp.eq.s32.totalorder %s32, 0
      %p205 = por %p203, %p204
      %p206 = scmp.ne.s32.totalorder %s194, %s195
      %p207 = scmp.eq.s32.totalorder %s33, 3
      %p208 = por %p206, %p207
      %p210 = scmp.ne.s32.totalorder %s195, %s209
      %p211 = scmp.eq.s32.totalorder %s33, 0
      %p212 = por %p210, %p211
      %s214 = sadd.s32 %s213, 1
      %p217 = scmp.eq.s32.totalorder %s27, 3
      %p218 = scmp.ne.s32.totalorder %s213, %s215
      %p219 = scmp.eq.s32.totalorder %s27, 0
      %p220 = por %p218, %p219
      %p221 = scmp.ne.s32.totalorder %s213, %s215
      %p222 = scmp.eq.s32.totalorder %s32, 3
      %p223 = por %p221, %p222
      %p224 = scmp.ne.s32.totalorder %s215, %s216
      %p225 = scmp.eq.s32.totalorder %s32, 0
      %p226 = por %p224, %p225
      %p227 = scmp.ne.s32.totalorder %s215, %s216
      %p228 = scmp.eq.s32.totalorder %s33, 3
      %p229 = por %p227, %p228
      %p231 = scmp.ne.s32.totalorder %s216, %s230
      %p232 = scmp.eq.s32.totalorder %s33, 0
      %p233 = por %p231, %p232
      %s235 = sadd.s32 %s234, 1
      %p238 = scmp.eq.s32.totalorder %s27, 3
      %p239 = scmp.ne.s32.totalorder %s234, %s236
      %p240 = scmp.eq.s32.totalorder %s27, 0
      %p241 = por %p239, %p240
      %p242 = scmp.ne.s32.totalorder %s234, %s236
      %p243 = scmp.eq.s32.totalorder %s32, 3
      %p244 = por %p242, %p243
      %p245 = scmp.ne.s32.totalorder %s236, %s237
      %p246 = scmp.eq.s32.totalorder %s32, 0
      %p247 = por %p245, %p246
      %p248 = scmp.ne.s32.totalorder %s236, %s237
      %p249 = scmp.eq.s32.totalorder %s33, 3
      %p250 = por %p248, %p249
      %p252 = scmp.ne.s32.totalorder %s237, %s251
      %p253 = scmp.eq.s32.totalorder %s33, 0
      %p254 = por %p252, %p253
      %s255 = ssub.s32 %s27, %s34
      %p256 = scmp.eq.s32.totalorder %s255, 0
      %s258 = sadd.s32 %s257, 1
      %s259 = scalar_select %p256, %s257, %s258
      %p262 = pneg %p256
      %p263 = scmp.eq.s32.totalorder %s27, 3
      %p264 = por %p262, %p263
      %p265 = scmp.ne.s32.totalorder %s257, %s260
      %p266 = scmp.eq.s32.totalorder %s27, 0
      %p267 = por %p265, %p266
      %p268 = scmp.ne.s32.totalorder %s257, %s260
      %p269 = scmp.eq.s32.totalorder %s32, 3
      %p270 = por %p268, %p269
      %p271 = scmp.ne.s32.totalorder %s260, %s261
      %p272 = scmp.eq.s32.totalorder %s32, 0
      %p273 = por %p271, %p272
      %p274 = scmp.ne.s32.totalorder %s260, %s261
      %p275 = scmp.eq.s32.totalorder %s33, 3
      %p276 = por %p274, %p275
      %p278 = scmp.ne.s32.totalorder %s261, %s277
      %p279 = scmp.eq.s32.totalorder %s33, 0
      %p280 = por %p278, %p279
      %p281 = scmp.le.s32.totalorder 1, %s27
      %p282 = scmp.lt.s32.totalorder %s27, 5
      %p283 = pnand %p281, %p282
      %p284 = pneg %p283
      // Predicated region
      $region9: #{tpu_custom_call.1} parent=5 // pred_check
        _
      $region10: #{tpu_custom_call.1} parent=5 // pred_check_branch
        %286 = sbr.rel (%p283) target = $region12
      $region11: #{tpu_custom_call.1} parent=5 // pred_region
        %s287 = ssub.s32 %s27, 1
        // Predicated region
        $region13: #{tpu_custom_call.1} parent=11 // pred_check
          %p288 = pneg %p100
        $region14: #{tpu_custom_call.1} parent=11 // pred_check_branch
          %290 = sbr.rel (%p288) target = $region16
        $region15: #{tpu_custom_call.1} parent=11 // pred_region
          %s292 = ssub.s32 128, 128
          %293 = vsyncadd [#allocation8], %s292
          %s295 = sshll.u32 [#allocation9], 4
          %s296 = int_to_ptr.vmem [resolvable:$true] %s295
          %298 = dma.hbm_to_vmem [thread:$0]  %s2, 128, %s296, [#allocation8]
        $region16: #{tpu_custom_call.1} parent=11 // pred_fallthru
          _
        // Predicated region
        $region17: #{tpu_custom_call.1} parent=11 // pred_check
          %p299 = pneg %p121
        $region18: #{tpu_custom_call.1} parent=11 // pred_check_branch
          %301 = sbr.rel (%p299) target = $region20
        $region19: #{tpu_custom_call.1} parent=11 // pred_region
          _
        $region20: #{tpu_custom_call.1} parent=11 // pred_fallthru
          _
        // Predicated region
        $region21: #{tpu_custom_call.1} parent=11 // pred_check
          %p302 = pneg %p142
        $region22: #{tpu_custom_call.1} parent=11 // pred_check_branch
          %304 = sbr.rel (%p302) target = $region24
        $region23: #{tpu_custom_call.1} parent=11 // pred_region
          _
        $region24: #{tpu_custom_call.1} parent=11 // pred_fallthru
          _
        // Predicated region
        $region25: #{tpu_custom_call.1} parent=11 // pred_check
          %p305 = pneg %p163
        $region26: #{tpu_custom_call.1} parent=11 // pred_check_branch
          %307 = sbr.rel (%p305) target = $region28
        $region27: #{tpu_custom_call.1} parent=11 // pred_region
          _
        $region28: #{tpu_custom_call.1} parent=11 // pred_fallthru
          _
        // Predicated region
        $region29: #{tpu_custom_call.1} parent=11 // pred_check
          %p308 = pneg %p184
        $region30: #{tpu_custom_call.1} parent=11 // pred_check_branch
          %310 = sbr.rel (%p308) target = $region32
        $region31: #{tpu_custom_call.1} parent=11 // pred_region
          %s312 = ssub.s32 512, 512
          %313 = vsyncadd [#allocation11], %s312
          %s314 = sshll.u32 [#allocation10], 4
          %s315 = int_to_ptr.vmem [resolvable:$true] %s314
          %320 = dma.hbm_to_vmem [thread:$0]  %s6, 512, %s315, [#allocation11], 256, 256, 16
        $region32: #{tpu_custom_call.1} parent=11 // pred_fallthru
          _
        // Predicated region
        $region33: #{tpu_custom_call.1} parent=11 // pred_check
          %p321 = pneg %p205
        $region34: #{tpu_custom_call.1} parent=11 // pred_check_branch
          %323 = sbr.rel (%p321) target = $region36
        $region35: #{tpu_custom_call.1} parent=11 // pred_region
          %s325 = ssub.s32 512, 512
          %326 = vsyncadd [#allocation11], %s325
          %s327 = sshll.u32 [#allocation12], 4
          %s328 = int_to_ptr.vmem [resolvable:$true] %s327
          %333 = dma.hbm_to_vmem [thread:$0]  %s7, 512, %s328, [#allocation11], 256, 256, 16
        $region36: #{tpu_custom_call.1} parent=11 // pred_fallthru
          _
        // Predicated region
        $region37: #{tpu_custom_call.1} parent=11 // pred_check
          %p334 = pneg %p226
        $region38: #{tpu_custom_call.1} parent=11 // pred_check_branch
          %336 = sbr.rel (%p334) target = $region40
        $region39: #{tpu_custom_call.1} parent=11 // pred_region
          %s338 = ssub.s32 2048, 2048
          %339 = vsyncadd [#allocation14], %s338
          %s340 = sshll.u32 [#allocation13], 4
          %s341 = int_to_ptr.vmem [resolvable:$true] %s340
          %346 = dma.hbm_to_vmem [thread:$0]  %s8, 2048, %s341, [#allocation14], 256, 256, 16
        $region40: #{tpu_custom_call.1} parent=11 // pred_fallthru
          _
        // Predicated region
        $region41: #{tpu_custom_call.1} parent=11 // pred_check
          %p347 = pneg %p247
        $region42: #{tpu_custom_call.1} parent=11 // pred_check_branch
          %349 = sbr.rel (%p347) target = $region44
        $region43: #{tpu_custom_call.1} parent=11 // pred_region
          _
        $region44: #{tpu_custom_call.1} parent=11 // pred_fallthru
          _
      $region12: #{tpu_custom_call.1} parent=5 // pred_fallthru
        _
      %p350 = scmp.lt.s32.totalorder %s27, 4
      // Predicated region
      $region45: #{tpu_custom_call.1} parent=5 // pred_check
        %p351 = pneg %p350
      $region46: #{tpu_custom_call.1} parent=5 // pred_check_branch
        %353 = sbr.rel (%p351) target = $region48
      $region47: #{tpu_custom_call.1} parent=5 // pred_region
        // Predicated region
        $region49: #{tpu_custom_call.1} parent=47 // pred_check
          %p354 = pneg %p47
        $region50: #{tpu_custom_call.1} parent=47 // pred_check_branch
          %356 = sbr.rel (%p354) target = $region52
        $region51: #{tpu_custom_call.1} parent=47 // pred_region
          %s357 = sand.u32 %s37, 1
          %s358 = scalar_lea.sflag [#allocation5], %s357
          %s359 = sand.u32 %s37, 1
          %s360 = smul.addr %s359, 2
          %s361 = scalar_lea.vmem [#allocation4], %s360
          %s363 = ssub.s32 32, 32
          %364 = vsyncadd %s358, %s363
          %s365 = smul.addr %s27, 32
          %s366 = scalar_lea.hbm %s0, %s365
          %s368 = sshll.u32 %s361, 4
          %s369 = int_to_ptr.vmem [resolvable:$true] %s368
          %371 = dma.hbm_to_vmem [thread:$0]  %s366, 32, %s369, %s358
        $region52: #{tpu_custom_call.1} parent=47 // pred_fallthru
          _
        // Predicated region
        $region53: #{tpu_custom_call.1} parent=47 // pred_check
          %p372 = pneg %p73
        $region54: #{tpu_custom_call.1} parent=47 // pred_check_branch
          %374 = sbr.rel (%p372) target = $region56
        $region55: #{tpu_custom_call.1} parent=47 // pred_region
          %s375 = sand.u32 %s27, 1
          %s376 = scalar_lea.sflag [#allocation8], %s375
          %s377 = sand.u32 %s63, 1
          %s378 = smul.addr %s377, 2
          %s379 = scalar_lea.vmem [#allocation7], %s378
          %s381 = ssub.s32 32, 32
          %382 = vsyncadd %s376, %s381
          %s383 = smul.addr %s27, 32
          %s384 = scalar_lea.hbm %s1, %s383
          %s386 = sshll.u32 %s379, 4
          %s387 = int_to_ptr.vmem [resolvable:$true] %s386
          %389 = dma.hbm_to_vmem [thread:$0]  %s384, 32, %s387, %s376
        $region56: #{tpu_custom_call.1} parent=47 // pred_fallthru
          _
      $region48: #{tpu_custom_call.1} parent=5 // pred_fallthru
        _
      %p390 = scmp.le.s32.totalorder 1, %s27
      %p391 = scmp.lt.s32.totalorder %s27, 5
      %p392 = pnand %p390, %p391
      %p393 = pneg %p392
      // Predicated region
      $region57: #{tpu_custom_call.1} parent=5 // pred_check
        _
      $region58: #{tpu_custom_call.1} parent=5 // pred_check_branch
        %395 = sbr.rel (%p392) target = $region60
      $region59: #{tpu_custom_call.1} parent=5 // pred_region
        %s396 = ssub.s32 %s27, 1
        %s397 = sand.u32 %s40, 1
        %s398 = scalar_lea.sflag [#allocation5], %s397
        %s399 = sand.u32 %s40, 1
        %s400 = smul.addr %s399, 2
        %s401 = scalar_lea.vmem [#allocation4], %s400
        // Predicated region
        $region61: #{tpu_custom_call.1} parent=59 // pred_check
          %p402 = pneg %p53
        $region62: #{tpu_custom_call.1} parent=59 // pred_check_branch
          %404 = sbr.rel (%p402) target = $region64
        $region63: #{tpu_custom_call.1} parent=59 // pred_region
          %405 = dma.done %s398, 32
        $region64: #{tpu_custom_call.1} parent=59 // pred_fallthru
          _
        %s406 = sand.u32 %s32, 1
        %s407 = scalar_lea.sflag [#allocation8], %s406
        %s408 = sand.u32 %s66, 1
        %s409 = smul.addr %s408, 2
        %s410 = scalar_lea.vmem [#allocation7], %s409
        // Predicated region
        $region65: #{tpu_custom_call.1} parent=59 // pred_check
          %p411 = pneg %p79
        $region66: #{tpu_custom_call.1} parent=59 // pred_check_branch
          %413 = sbr.rel (%p411) target = $region68
        $region67: #{tpu_custom_call.1} parent=59 // pred_region
          %414 = dma.done %s407, 32
        $region68: #{tpu_custom_call.1} parent=59 // pred_fallthru
          _
        // Predicated region
        $region69: #{tpu_custom_call.1} parent=59 // pred_check
          %p415 = pneg %p100
        $region70: #{tpu_custom_call.1} parent=59 // pred_check_branch
          %417 = sbr.rel (%p415) target = $region72
        $region71: #{tpu_custom_call.1} parent=59 // pred_region
          %418 = dma.done [#allocation8], 128
        $region72: #{tpu_custom_call.1} parent=59 // pred_fallthru
          _
        // Predicated region
        $region73: #{tpu_custom_call.1} parent=59 // pred_check
          %p419 = pneg %p184
        $region74: #{tpu_custom_call.1} parent=59 // pred_check_branch
          %421 = sbr.rel (%p419) target = $region76
        $region75: #{tpu_custom_call.1} parent=59 // pred_region
          %422 = dma.done [#allocation11], 512
        $region76: #{tpu_custom_call.1} parent=59 // pred_fallthru
          _
        // Predicated region
        $region77: #{tpu_custom_call.1} parent=59 // pred_check
          %p423 = pneg %p205
        $region78: #{tpu_custom_call.1} parent=59 // pred_check_branch
          %425 = sbr.rel (%p423) target = $region80
        $region79: #{tpu_custom_call.1} parent=59 // pred_region
          %426 = dma.done [#allocation11], 512
        $region80: #{tpu_custom_call.1} parent=59 // pred_fallthru
          _
        // Predicated region
        $region81: #{tpu_custom_call.1} parent=59 // pred_check
          %p427 = pneg %p226
        $region82: #{tpu_custom_call.1} parent=59 // pred_check_branch
          %429 = sbr.rel (%p427) target = $region84
        $region83: #{tpu_custom_call.1} parent=59 // pred_region
          %430 = dma.done [#allocation14], 2048
        $region84: #{tpu_custom_call.1} parent=59 // pred_fallthru
          _
        %s431 = sand.u32 %s40, 1
        %s432 = scalar_lea.sflag [#allocation5], %s431
        %s433 = sand.u32 %s40, 1
        %s434 = smul.addr %s433, 2
        %s435 = scalar_lea.vmem [#allocation4], %s434
        %p436 = pneg %p53
        %p437 = pneg %p50
        %s438 = sand.u32 %s32, 1
        %s439 = scalar_lea.sflag [#allocation8], %s438
        %s440 = sand.u32 %s66, 1
        %s441 = smul.addr %s440, 2
        %s442 = scalar_lea.vmem [#allocation7], %s441
        %p443 = pneg %p79
        %p444 = pneg %p76
        %p445 = pneg %p100
        %p446 = pneg %p97
        %p447 = pneg %p121
        %p448 = pneg %p118
        %p449 = pneg %p142
        %p450 = pneg %p139
        %p451 = pneg %p163
        %p452 = pneg %p160
        %p453 = pneg %p184
        %p454 = pneg %p181
        %p455 = pneg %p205
        %p456 = pneg %p202
        %p457 = pneg %p226
        %p458 = pneg %p223
        %p459 = pneg %p247
        %p460 = pneg %p244
        %p461 = pneg %p273
        %p462 = pneg %p270
        %s463 = sand.u32 %s260, 1
        %s464 = scalar_lea.sflag [#allocation6], %s463
        %s465 = sand.u32 %s260, 1
        %s466 = smul.addr %s465, 2
        %s467 = scalar_lea.vmem [#allocation15], %s466
        %p468 = scmp.eq.s32.totalorder %s32, 0
        // Predicated region
        $region85: #{tpu_custom_call.1} parent=59 // pred_check
          %p469 = pneg %p468
        $region86: #{tpu_custom_call.1} parent=59 // pred_check_branch
          %471 = sbr.rel (%p469) target = $region88
        $region87: #{tpu_custom_call.1} parent=59 // pred_region
          %vm472 = vcmask 517120
          %473 = vst.msk [vmem:[#allocation2] sm:$0x3] %vm472, 0.0
          %474 = vst.msk [vmem:[#allocation3] sm:$0x3] %vm472, 0.0
        $region88: #{tpu_custom_call.1} parent=59 // pred_fallthru
          _
        %v475 = vld [vmem:[%s401] sm:$0x3]
        %v476 = vld [vmem:[%s410] sm:$0x3]
        %v477 = vld [vmem:[#allocation9] sm:$0x3f]
        %v478 = vld [vmem:[%s3] sm:$0x1]
        %v480 = vlaneseq
        %v481 = vshrl.u32 %v480, 7
        %v482 = vsub.s32 0, %v481
        %v483 = vrot.slane %v478, %v482
        %vm485 = vcmask 48128
        %v487 = vsel %vm485, %v475, 0
        %vm489 = vcmask 1045504
        %v491 = vsel %vm489, %v477, 0
        %493 = vmatprep.subr.mxu0 0.0
        %494 = vmatpush1.msra.mxu0 %v491
        %495 = vmatprep.subr.mxu0 0.0
        %496 = vmatpush1.msra.mxu0 0.0
        %497 = vmatprep.subr.mxu0 0.0
        %498 = vmatpush1.msra.mxu0 0.0
        %499 = vmatprep.subr.mxu0 0.0
        %500 = vmatpush1.msra.mxu0 0.0
        %501 = vmatprep.subr.mxu0 0.0
        %502 = vmatpush1.msra.mxu0 0.0
        %503 = vmatprep.subr.mxu0 0.0
        %504 = vmatpush1.msra.mxu0 0.0
        %505 = vmatprep.subr.mxu0 0.0
        %506 = vmatpush1.msra.mxu0 0.0
        %507 = vmatprep.subr.mxu0 0.0
        %508 = vmatpush1.msra.mxu0 0.0
        %509 = vmatprep.subr.mxu0 0.0
        %510 = vmatpush1.msra.mxu0 0.0
        %511 = vmatprep.subr.mxu0 0.0
        %512 = vmatpush1.msra.mxu0 0.0
        %513 = vmatprep.subr.mxu0 0.0
        %514 = vmatpush1.msra.mxu0 0.0
        %515 = vmatprep.subr.mxu0 0.0
        %516 = vmatpush1.msra.mxu0 0.0
        %517 = vmatprep.subr.mxu0 0.0
        %518 = vmatpush1.msra.mxu0 0.0
        %519 = vmatprep.subr.mxu0 0.0
        %520 = vmatpush1.msra.mxu0 0.0
        %521 = vmatprep.subr.mxu0 0.0
        %522 = vmatpush1.msra.mxu0 0.0
        %523 = vmatprep.subr.mxu0 0.0
        %524 = vmatpush1.msra.mxu0 0.0
        %525 = vmatprep.subr.mxu0 0.0
        %526 = vmatpush1.msra.mxu0 0.0
        %527 = vmatprep.subr.mxu0 0.0
        %528 = vmatpush1.msra.mxu0 0.0
        %529 = vmatprep.subr.mxu0 0.0
        %530 = vmatpush1.msra.mxu0 0.0
        %531 = vmatprep.subr.mxu0 0.0
        %532 = vmatpush1.msra.mxu0 0.0
        %533 = vmatprep.subr.mxu0 0.0
        %534 = vmatpush1.msra.mxu0 0.0
        %535 = vmatprep.subr.mxu0 0.0
        %536 = vmatpush1.msra.mxu0 0.0
        %537 = vmatprep.subr.mxu0 0.0
        %538 = vmatpush1.msra.mxu0 0.0
        %539 = vmatprep.subr.mxu0 0.0
        %540 = vmatpush1.msra.mxu0 0.0
        %541 = vmatprep.subr.mxu0 0.0
        %542 = vmatpush1.msra.mxu0 0.0
        %543 = vmatprep.subr.mxu0 0.0
        %544 = vmatpush1.msra.mxu0 0.0
        %545 = vmatprep.subr.mxu0 0.0
        %546 = vmatpush1.msra.mxu0 0.0
        %547 = vmatprep.subr.mxu0 0.0
        %548 = vmatpush1.msra.mxu0 0.0
        %549 = vmatprep.subr.mxu0 0.0
        %550 = vmatpush1.msra.mxu0 0.0
        %551 = vmatprep.subr.mxu0 0.0
        %552 = vmatpush1.msra.mxu0 0.0
        %553 = vmatprep.subr.mxu0 0.0
        %554 = vmatpush1.msra.mxu0 0.0
        %555 = vmatprep.subr.mxu0 0.0
        %556 = vmatpush1.msra.mxu0 0.0
        %557 = vmatprep.mubr.f32.mxu0 0.0
        %558 = vmatmul.mubr.f32.gmra.mrb[0].mxu0 %v487
        %v559 = vpop.f32.mrb[0].mxu0
        %v560 = vadd.f32 %v483, %v559
        %v561 = vpop.f32.mrb[0].mxu0
        %562 = vdwg.mxu0
        %v563 = vld [vmem:[%s4] sm:$0xf]
        %v564 = vld [vmem:[%s5] sm:$0x1]
        %v566 = vlaneseq
        %v567 = vshrl.u32 %v566, 7
        %v568 = vsub.s32 0, %v567
        %v569 = vrot.slane %v564, %v568
        %vm571 = vcmask 31744
        %v573 = vsel %vm571, %v476, 0
        %vm575 = vcmask 1043456
        %v577 = vsel %vm575, %v563, 0
        %579 = vmatprep.subr.mxu0 0.0
        %580 = vmatpush1.msra.mxu0 %v577
        %581 = vmatprep.subr.mxu0 0.0
        %582 = vmatpush1.msra.mxu0 0.0
        %583 = vmatprep.subr.mxu0 0.0
        %584 = vmatpush1.msra.mxu0 0.0
        %585 = vmatprep.subr.mxu0 0.0
        %586 = vmatpush1.msra.mxu0 0.0
        %587 = vmatprep.subr.mxu0 0.0
        %588 = vmatpush1.msra.mxu0 0.0
        %589 = vmatprep.subr.mxu0 0.0
        %590 = vmatpush1.msra.mxu0 0.0
        %591 = vmatprep.subr.mxu0 0.0
        %592 = vmatpush1.msra.mxu0 0.0
        %593 = vmatprep.subr.mxu0 0.0
        %594 = vmatpush1.msra.mxu0 0.0
        %595 = vmatprep.subr.mxu0 0.0
        %596 = vmatpush1.msra.mxu0 0.0
        %597 = vmatprep.subr.mxu0 0.0
        %598 = vmatpush1.msra.mxu0 0.0
        %599 = vmatprep.subr.mxu0 0.0
        %600 = vmatpush1.msra.mxu0 0.0
        %601 = vmatprep.subr.mxu0 0.0
        %602 = vmatpush1.msra.mxu0 0.0
        %603 = vmatprep.subr.mxu0 0.0
        %604 = vmatpush1.msra.mxu0 0.0
        %605 = vmatprep.subr.mxu0 0.0
        %606 = vmatpush1.msra.mxu0 0.0
        %607 = vmatprep.subr.mxu0 0.0
        %608 = vmatpush1.msra.mxu0 0.0
        %609 = vmatprep.subr.mxu0 0.0
        %610 = vmatpush1.msra.mxu0 0.0
        %611 = vmatprep.subr.mxu0 0.0
        %612 = vmatpush1.msra.mxu0 0.0
        %613 = vmatprep.subr.mxu0 0.0
        %614 = vmatpush1.msra.mxu0 0.0
        %615 = vmatprep.subr.mxu0 0.0
        %616 = vmatpush1.msra.mxu0 0.0
        %617 = vmatprep.subr.mxu0 0.0
        %618 = vmatpush1.msra.mxu0 0.0
        %619 = vmatprep.subr.mxu0 0.0
        %620 = vmatpush1.msra.mxu0 0.0
        %621 = vmatprep.subr.mxu0 0.0
        %622 = vmatpush1.msra.mxu0 0.0
        %623 = vmatprep.subr.mxu0 0.0
        %624 = vmatpush1.msra.mxu0 0.0
        %625 = vmatprep.subr.mxu0 0.0
        %626 = vmatpush1.msra.mxu0 0.0
        %627 = vmatprep.subr.mxu0 0.0
        %628 = vmatpush1.msra.mxu0 0.0
        %629 = vmatprep.subr.mxu0 0.0
        %630 = vmatpush1.msra.mxu0 0.0
        %631 = vmatprep.subr.mxu0 0.0
        %632 = vmatpush1.msra.mxu0 0.0
        %633 = vmatprep.subr.mxu0 0.0
        %634 = vmatpush1.msra.mxu0 0.0
        %635 = vmatprep.subr.mxu0 0.0
        %636 = vmatpush1.msra.mxu0 0.0
        %637 = vmatprep.subr.mxu0 0.0
        %638 = vmatpush1.msra.mxu0 0.0
        %639 = vmatprep.subr.mxu0 0.0
        %640 = vmatpush1.msra.mxu0 0.0
        %641 = vmatprep.subr.mxu0 0.0
        %642 = vmatpush1.msra.mxu0 0.0
        %643 = vmatprep.mubr.f32.mxu0 0.0
        %644 = vmatmul.mubr.f32.gmra.mrb[0].mxu0 %v573
        %v645 = vpop.f32.mrb[0].mxu0
        %v646 = vadd.f32 %v569, %v645
        %v647 = vpop.f32.mrb[0].mxu0
        %648 = vdwg.mxu0
        %v649 = vld [vmem:[#allocation2] sm:$0x3]
        %v650 = vld [vmem:[#allocation3] sm:$0x3]
        %v651 = vld [vmem:[#allocation10] sm:$0xff]
        %v652 = vld [vmem:[#allocation10 + $0x8] sm:$0xff]
        %v653 = vld [vmem:[#allocation10 + $0x10] sm:$0x3]
        %v654 = vld [vmem:[#allocation10 + $0x18] sm:$0x3]
        %v655 = vld [vmem:[#allocation12] sm:$0xff]
        %v656 = vld [vmem:[#allocation12 + $0x8] sm:$0xff]
        %v657 = vld [vmem:[#allocation12 + $0x10] sm:$0x3]
        %v658 = vld [vmem:[#allocation12 + $0x18] sm:$0x3]
        %vm659 = vcmask 80896
        %v661 = vsel %vm659, %v646, 0
        %vm663 = vcmask 1041408
        %v665 = vsel %vm663, %v657, 0
        %v668 = vsel %vm663, %v658, 0
        %670 = vmatprep.subr.mxu0 %v656
        %671 = vmatpush1.msra.mxu0 %v655
        %672 = vmatprep.subr.mxu0 %v668
        %673 = vmatpush1.msra.mxu0 %v665
        %674 = vmatprep.subr.mxu0 0.0
        %675 = vmatpush1.msra.mxu0 0.0
        %676 = vmatprep.subr.mxu0 0.0
        %677 = vmatpush1.msra.mxu0 0.0
        %678 = vmatprep.subr.mxu0 0.0
        %679 = vmatpush1.msra.mxu0 0.0
        %680 = vmatprep.subr.mxu0 0.0
        %681 = vmatpush1.msra.mxu0 0.0
        %682 = vmatprep.subr.mxu0 0.0
        %683 = vmatpush1.msra.mxu0 0.0
        %684 = vmatprep.subr.mxu0 0.0
        %685 = vmatpush1.msra.mxu0 0.0
        %686 = vmatprep.subr.mxu0 0.0
        %687 = vmatpush1.msra.mxu0 0.0
        %688 = vmatprep.subr.mxu0 0.0
        %689 = vmatpush1.msra.mxu0 0.0
        %690 = vmatprep.subr.mxu0 0.0
        %691 = vmatpush1.msra.mxu0 0.0
        %692 = vmatprep.subr.mxu0 0.0
        %693 = vmatpush1.msra.mxu0 0.0
        %694 = vmatprep.subr.mxu0 0.0
        %695 = vmatpush1.msra.mxu0 0.0
        %696 = vmatprep.subr.mxu0 0.0
        %697 = vmatpush1.msra.mxu0 0.0
        %698 = vmatprep.subr.mxu0 0.0
        %699 = vmatpush1.msra.mxu0 0.0
        %700 = vmatprep.subr.mxu0 0.0
        %701 = vmatpush1.msra.mxu0 0.0
        %702 = vmatprep.subr.mxu0 0.0
        %703 = vmatpush1.msra.mxu0 0.0
        %704 = vmatprep.subr.mxu0 0.0
        %705 = vmatpush1.msra.mxu0 0.0
        %706 = vmatprep.subr.mxu0 0.0
        %707 = vmatpush1.msra.mxu0 0.0
        %708 = vmatprep.subr.mxu0 0.0
        %709 = vmatpush1.msra.mxu0 0.0
        %710 = vmatprep.subr.mxu0 0.0
        %711 = vmatpush1.msra.mxu0 0.0
        %712 = vmatprep.subr.mxu0 0.0
        %713 = vmatpush1.msra.mxu0 0.0
        %714 = vmatprep.subr.mxu0 0.0
        %715 = vmatpush1.msra.mxu0 0.0
        %716 = vmatprep.subr.mxu0 0.0
        %717 = vmatpush1.msra.mxu0 0.0
        %718 = vmatprep.subr.mxu0 0.0
        %719 = vmatpush1.msra.mxu0 0.0
        %720 = vmatprep.subr.mxu0 0.0
        %721 = vmatpush1.msra.mxu0 0.0
        %722 = vmatprep.subr.mxu0 0.0
        %723 = vmatpush1.msra.mxu0 0.0
        %724 = vmatprep.subr.mxu0 0.0
        %725 = vmatpush1.msra.mxu0 0.0
        %726 = vmatprep.subr.mxu0 0.0
        %727 = vmatpush1.msra.mxu0 0.0
        %728 = vmatprep.subr.mxu0 0.0
        %729 = vmatpush1.msra.mxu0 0.0
        %730 = vmatprep.subr.mxu0 0.0
        %731 = vmatpush1.msra.mxu0 0.0
        %732 = vmatprep.subr.mxu0 0.0
        %733 = vmatpush1.msra.mxu0 0.0
        %734 = vmatprep.mubr.f32.mxu0 0.0
        %735 = vmatmul.mubr.f32.gmra.mrb[0].mxu0 %v661
        %v736 = vpop.f32.mrb[0].mxu0
        %v737 = vadd.f32 0.0, %v736
        %v738 = vpop.f32.mrb[0].mxu0
        %v739 = vadd.f32 0.0, %v738
        %740 = vdwg.mxu0
        %v742 = vsel %vm659, %v560, 0
        %v745 = vsel %vm663, %v653, 0
        %v748 = vsel %vm663, %v654, 0
        %750 = vmatprep.subr.mxu0 %v652
        %751 = vmatpush1.msra.mxu0 %v651
        %752 = vmatprep.subr.mxu0 %v748
        %753 = vmatpush1.msra.mxu0 %v745
        %754 = vmatprep.subr.mxu0 0.0
        %755 = vmatpush1.msra.mxu0 0.0
        %756 = vmatprep.subr.mxu0 0.0
        %757 = vmatpush1.msra.mxu0 0.0
        %758 = vmatprep.subr.mxu0 0.0
        %759 = vmatpush1.msra.mxu0 0.0
        %760 = vmatprep.subr.mxu0 0.0
        %761 = vmatpush1.msra.mxu0 0.0
        %762 = vmatprep.subr.mxu0 0.0
        %763 = vmatpush1.msra.mxu0 0.0
        %764 = vmatprep.subr.mxu0 0.0
        %765 = vmatpush1.msra.mxu0 0.0
        %766 = vmatprep.subr.mxu0 0.0
        %767 = vmatpush1.msra.mxu0 0.0
        %768 = vmatprep.subr.mxu0 0.0
        %769 = vmatpush1.msra.mxu0 0.0
        %770 = vmatprep.subr.mxu0 0.0
        %771 = vmatpush1.msra.mxu0 0.0
        %772 = vmatprep.subr.mxu0 0.0
        %773 = vmatpush1.msra.mxu0 0.0
        %774 = vmatprep.subr.mxu0 0.0
        %775 = vmatpush1.msra.mxu0 0.0
        %776 = vmatprep.subr.mxu0 0.0
        %777 = vmatpush1.msra.mxu0 0.0
        %778 = vmatprep.subr.mxu0 0.0
        %779 = vmatpush1.msra.mxu0 0.0
        %780 = vmatprep.subr.mxu0 0.0
        %781 = vmatpush1.msra.mxu0 0.0
        %782 = vmatprep.subr.mxu0 0.0
        %783 = vmatpush1.msra.mxu0 0.0
        %784 = vmatprep.subr.mxu0 0.0
        %785 = vmatpush1.msra.mxu0 0.0
        %786 = vmatprep.subr.mxu0 0.0
        %787 = vmatpush1.msra.mxu0 0.0
        %788 = vmatprep.subr.mxu0 0.0
        %789 = vmatpush1.msra.mxu0 0.0
        %790 = vmatprep.subr.mxu0 0.0
        %791 = vmatpush1.msra.mxu0 0.0
        %792 = vmatprep.subr.mxu0 0.0
        %793 = vmatpush1.msra.mxu0 0.0
        %794 = vmatprep.subr.mxu0 0.0
        %795 = vmatpush1.msra.mxu0 0.0
        %796 = vmatprep.subr.mxu0 0.0
        %797 = vmatpush1.msra.mxu0 0.0
        %798 = vmatprep.subr.mxu0 0.0
        %799 = vmatpush1.msra.mxu0 0.0
        %800 = vmatprep.subr.mxu0 0.0
        %801 = vmatpush1.msra.mxu0 0.0
        %802 = vmatprep.subr.mxu0 0.0
        %803 = vmatpush1.msra.mxu0 0.0
        %804 = vmatprep.subr.mxu0 0.0
        %805 = vmatpush1.msra.mxu0 0.0
        %806 = vmatprep.subr.mxu0 0.0
        %807 = vmatpush1.msra.mxu0 0.0
        %808 = vmatprep.subr.mxu0 0.0
        %809 = vmatpush1.msra.mxu0 0.0
        %810 = vmatprep.subr.mxu0 0.0
        %811 = vmatpush1.msra.mxu0 0.0
        %812 = vmatprep.subr.mxu0 0.0
        %813 = vmatpush1.msra.mxu0 0.0
        %814 = vmatprep.mubr.f32.mxu0 0.0
        %815 = vmatmul.mubr.f32.gmra.mrb[0].mxu0 %v742
        %v816 = vpop.f32.mrb[0].mxu0
        %v817 = vadd.f32 %v737, %v816
        %v818 = vpop.f32.mrb[0].mxu0
        %v819 = vadd.f32 %v739, %v818
        %820 = vdwg.mxu0
        %v821 = vld [vmem:[#allocation13] sm:$0xff]
        %v822 = vld [vmem:[#allocation13 + $0x8] sm:$0xff]
        %v823 = vld [vmem:[#allocation13 + $0x10] sm:$0xff]
        %v824 = vld [vmem:[#allocation13 + $0x18] sm:$0xff]
        %v825 = vld [vmem:[#allocation13 + $0x20] sm:$0xff]
        %v826 = vld [vmem:[#allocation13 + $0x28] sm:$0xff]
        %v827 = vld [vmem:[#allocation13 + $0x30] sm:$0xff]
        %v828 = vld [vmem:[#allocation13 + $0x38] sm:$0xff]
        %v829 = vld [vmem:[#allocation13 + $0x40] sm:$0xff]
        %v830 = vld [vmem:[#allocation13 + $0x48] sm:$0xff]
        %v831 = vld [vmem:[#allocation13 + $0x50] sm:$0xff]
        %v832 = vld [vmem:[#allocation13 + $0x58] sm:$0xff]
        %v833 = vld [vmem:[#allocation13 + $0x60] sm:$0xff]
        %v834 = vld [vmem:[#allocation13 + $0x68] sm:$0xff]
        %v835 = vld [vmem:[#allocation13 + $0x70] sm:$0xff]
        %v836 = vld [vmem:[#allocation13 + $0x78] sm:$0xff]
        %vm837 = vcmask 523264
        %v839 = vsel %vm837, %v649, 0
        %841 = vmatprep.subr.mxu0 %v822
        %842 = vmatpush1.msra.mxu0 %v821
        %843 = vmatprep.subr.mxu0 %v824
        %844 = vmatpush1.msra.mxu0 %v823
        %845 = vmatprep.subr.mxu0 %v826
        %846 = vmatpush1.msra.mxu0 %v825
        %847 = vmatprep.subr.mxu0 %v828
        %848 = vmatpush1.msra.mxu0 %v827
        %849 = vmatprep.subr.mxu0 %v830
        %850 = vmatpush1.msra.mxu0 %v829
        %851 = vmatprep.subr.mxu0 %v832
        %852 = vmatpush1.msra.mxu0 %v831
        %853 = vmatprep.subr.mxu0 %v834
        %854 = vmatpush1.msra.mxu0 %v833
        %855 = vmatprep.subr.mxu0 %v836
        %856 = vmatpush1.msra.mxu0 %v835
        %857 = vmatprep.subr.mxu0 0.0
        %858 = vmatpush1.msra.mxu0 0.0
        %859 = vmatprep.subr.mxu0 0.0
        %860 = vmatpush1.msra.mxu0 0.0
        %861 = vmatprep.subr.mxu0 0.0
        %862 = vmatpush1.msra.mxu0 0.0
        %863 = vmatprep.subr.mxu0 0.0
        %864 = vmatpush1.msra.mxu0 0.0
        %865 = vmatprep.subr.mxu0 0.0
        %866 = vmatpush1.msra.mxu0 0.0
        %867 = vmatprep.subr.mxu0 0.0
        %868 = vmatpush1.msra.mxu0 0.0
        %869 = vmatprep.subr.mxu0 0.0
        %870 = vmatpush1.msra.mxu0 0.0
        %871 = vmatprep.subr.mxu0 0.0
        %872 = vmatpush1.msra.mxu0 0.0
        %873 = vmatprep.subr.mxu0 0.0
        %874 = vmatpush1.msra.mxu0 0.0
        %875 = vmatprep.subr.mxu0 0.0
        %876 = vmatpush1.msra.mxu0 0.0
        %877 = vmatprep.subr.mxu0 0.0
        %878 = vmatpush1.msra.mxu0 0.0
        %879 = vmatprep.subr.mxu0 0.0
        %880 = vmatpush1.msra.mxu0 0.0
        %881 = vmatprep.subr.mxu0 0.0
        %882 = vmatpush1.msra.mxu0 0.0
        %883 = vmatprep.subr.mxu0 0.0
        %884 = vmatpush1.msra.mxu0 0.0
        %885 = vmatprep.subr.mxu0 0.0
        %886 = vmatpush1.msra.mxu0 0.0
        %887 = vmatprep.subr.mxu0 0.0
        %888 = vmatpush1.msra.mxu0 0.0
        %889 = vmatprep.subr.mxu0 0.0
        %890 = vmatpush1.msra.mxu0 0.0
        %891 = vmatprep.subr.mxu0 0.0
        %892 = vmatpush1.msra.mxu0 0.0
        %893 = vmatprep.subr.mxu0 0.0
        %894 = vmatpush1.msra.mxu0 0.0
        %895 = vmatprep.subr.mxu0 0.0
        %896 = vmatpush1.msra.mxu0 0.0
        %897 = vmatprep.subr.mxu0 0.0
        %898 = vmatpush1.msra.mxu0 0.0
        %899 = vmatprep.subr.mxu0 0.0
        %900 = vmatpush1.msra.mxu0 0.0
        %901 = vmatprep.subr.mxu0 0.0
        %902 = vmatpush1.msra.mxu0 0.0
        %903 = vmatprep.subr.mxu0 0.0
        %904 = vmatpush1.msra.mxu0 0.0
        %905 = vmatprep.mubr.f32.mxu0 0.0
        %906 = vmatmul.mubr.f32.gmra.mrb[0].mxu0 %v839
        %v907 = vpop.f32.mrb[0].mxu0
        %v908 = vadd.f32 0.0, %v907
        %v909 = vpop.f32.mrb[0].mxu0
        %v910 = vadd.f32 0.0, %v909
        %911 = vdwg.mxu0
        %v912 = vadd.f32 %v817, %v908
        %v913 = vadd.f32 %v819, %v910
        %v914 = vld [vmem:[%s9] sm:$0x3]
        %v916 = vlaneseq
        %v917 = vshrl.u32 %v916, 7
        %v918 = vsub.s32 0, %v917
        %v919 = vrot.slane %v914, %v918
        %v920 = vlaneseq
        %v921 = vshrl.u32 %v920, 7
        %v922 = vsub.s32 1, %v921
        %v923 = vrot.slane %v914, %v922
        %v926 = vadd.f32 %v912, %v919
        %v927 = vadd.f32 %v913, %v923
        %v928 = vsub.f32 0.0, %v926
        %v929 = vmul.f32 %v928, 1.442695
        %v930 = vpow.pop %v929
        %v931 = vadd.f32 %v930, 1.0
        %v932 = vrcp.pop %v931
        %v933 = vmul.f32 1.0, %v932
        %v934 = vtanh.pop %v927
        %v935 = vsub.f32 0.0, %v927
        %v936 = vmul.f32 %v935, 1.442695
        %v937 = vpow.pop %v936
        %v938 = vadd.f32 %v937, 1.0
        %v939 = vrcp.pop %v938
        %v940 = vmul.f32 1.0, %v939
        %942 = vrot.lane.b32.xlu0 %v650, 64
        %v943 = vpop.permute.xlu0 %942
        %v945 = vmul.f32 %v933, %v943
        %v946 = vmul.f32 %v933, %v934
        %948 = vrot.lane.b32.xlu0 %v946, 64
        %v949 = vpop.permute.xlu0 %948
        %v951 = vadd.f32 %v945, %v949
        %v952 = vtanh.pop %v951
        %v953 = vmul.f32 %v940, %v952
        %955 = vrot.lane.b32.xlu0 %v953, 64
        %v956 = vpop.permute.xlu0 %955
        %vm958 = vcmask 517120
        %959 = vst.msk [vmem:[#allocation2] sm:$0x3] %vm958, %v956
        %961 = vrot.lane.b32.xlu0 %v951, 64
        %v962 = vpop.permute.xlu0 %961
        %964 = vst.msk [vmem:[#allocation3] sm:$0x3] %vm958, %v962
        %965 = vst.msk [vmem:[%s467] sm:$0x3] %vm958, %v956
        %s966 = sand.u32 %s260, 1
        %s967 = scalar_lea.sflag [#allocation6], %s966
        %s968 = sand.u32 %s260, 1
        %s969 = smul.addr %s968, 2
        %s970 = scalar_lea.vmem [#allocation15], %s969
        // Predicated region
        $region89: #{tpu_custom_call.1} parent=59 // pred_check
          %p971 = pneg %p270
        $region90: #{tpu_custom_call.1} parent=59 // pred_check_branch
          %973 = sbr.rel (%p971) target = $region92
        $region91: #{tpu_custom_call.1} parent=59 // pred_region
          %s975 = ssub.s32 32, 32
          %976 = vsyncadd %s967, %s975
          %s977 = smul.addr %s32, 32
          %s978 = scalar_lea.hbm %s10, %s977
          %s980 = sshll.u32 %s970, 4
          %s981 = int_to_ptr.vmem [resolvable:$true] %s980
          %983 = dma.vmem_to_hbm [thread:$0]  %s981, 32, %s978, %s967
        $region92: #{tpu_custom_call.1} parent=59 // pred_fallthru
          _
      $region60: #{tpu_custom_call.1} parent=5 // pred_fallthru
        _
      %p984 = scmp.le.s32.totalorder 2, %s27
      // Predicated region
      $region93: #{tpu_custom_call.1} parent=5 // pred_check
        %p985 = pneg %p984
      $region94: #{tpu_custom_call.1} parent=5 // pred_check_branch
        %987 = sbr.rel (%p985) target = $region96
      $region95: #{tpu_custom_call.1} parent=5 // pred_region
        %s988 = ssub.s32 %s27, 2
        // Predicated region
        $region97: #{tpu_custom_call.1} parent=95 // pred_check
          %p989 = pneg %p276
        $region98: #{tpu_custom_call.1} parent=95 // pred_check_branch
          %991 = sbr.rel (%p989) target = $region100
        $region99: #{tpu_custom_call.1} parent=95 // pred_region
          %s992 = sand.u32 %s261, 1
          %s993 = scalar_lea.sflag [#allocation6], %s992
          %s994 = sand.u32 %s261, 1
          %s995 = smul.addr %s994, 2
          %s996 = scalar_lea.vmem [#allocation15], %s995
          %997 = dma.done %s993, 32
        $region100: #{tpu_custom_call.1} parent=95 // pred_fallthru
          _
      $region96: #{tpu_custom_call.1} parent=5 // pred_fallthru
        _
    $region6: #{tpu_custom_call.1} parent=1 // loop_footer
      %s31 = sadd.s32 1, %s27
    $region7: #{tpu_custom_call.1} parent=1 // loop_footer_branch
      %26 = sbr.rel target = $region3
    $region8: #{tpu_custom_call.1} parent=1 // loop_exit
      _
    %998 = vsyncpa [#allocation5], 1
    %s999 = scalar_lea.sflag [#allocation5], 1
    %1000 = vsyncpa %s999, 1
    %1001 = vsyncpa [#allocation8], 1
    %s1002 = scalar_lea.sflag [#allocation8], 1
    %1003 = vsyncpa %s1002, 1
    %1004 = vsyncpa [#allocation11], 1
    %1005 = vsyncpa [#allocation14], 1
    %1006 = vsyncpa [#allocation6], 1
    %s1007 = scalar_lea.sflag [#allocation6], 1
    %1008 = vsyncpa %s1007, 1

</llo_original>
